<compile_context>
chip_gen: v7x
topology: tpu7x:2x2x1
jax: 0.10.0
libtpu: 0.0.40
codegen_flags: <defaults>
</compile_context>

<pallas_src>
import functools
import math

import jax
import jax.numpy as jnp
from jax.experimental import pallas as pl
from jax.experimental.pallas import tpu as pltpu


# ----------------------------------------------------------------------------
# Helpers
# ----------------------------------------------------------------------------
def _round_up(x, m):
    return ((x + m - 1) // m) * m


def _tile_and_pad(size, target, granule, min_tile):
    """Choose (tile, padded_size) for one matmul dimension.

    Preference order:
      (a) single full-extent tile when the dim fits `target` (no padding, no copy;
          full-dim blocks are always legal regardless of alignment);
      (b) an exact divisor of the granule-rounded size that is >= min_tile;
      (c) pad the dim up to a multiple of the target tile (never collapse to tiny tiles).
    """
    if size <= target:
        return size, size
    base = _round_up(size, granule)
    best = None
    t = granule
    while t <= target:
        if base % t == 0:
            best = t
        t += granule
    if best is not None and best >= min_tile:
        return best, base
    tile = (target // granule) * granule
    return tile, _round_up(base, tile)


def _pad_rows(wm, kp):
    """Zero-pad the K (row) dimension of a 2-D weight matrix up to kp."""
    k = wm.shape[0]
    return wm if k == kp else jnp.pad(wm, ((0, kp - k), (0, 0)))


# ----------------------------------------------------------------------------
# Pallas kernel: grouped, tiled matmul + bias (+ optional ReLU)
#   a: (G, M, K) bf16, w: (G, K, N) bf16, b: (G, 1, N) f32 -> (G, M, N) out_dtype
# ----------------------------------------------------------------------------
def _gmm_bias_kernel(a_ref, w_ref, b_ref, o_ref, acc_ref, *, relu):
    k = pl.program_id(3)

    @pl.when(k == 0)
    def _():
        acc_ref[...] = jnp.zeros_like(acc_ref)

    acc_ref[...] += jnp.dot(a_ref[0], w_ref[0], preferred_element_type=jnp.float32)

    @pl.when(k == pl.num_programs(3) - 1)
    def _():
        out = acc_ref[...] + b_ref[0]          # (tm, tn) + (1, tn)
        if relu:
            out = jnp.maximum(out, 0.0)
        o_ref[0] = out.astype(o_ref.dtype)


def grouped_matmul_bias(a, w, b, *, relu, out_dtype,
                        tm_target=512, tn_target=1024, tk_target=1024):
    """a: (G, M, K), w: (G, K, N), b: (G, N) -> (G, M, N).  bf16 MXU, f32 accumulate."""
    G, M, K = a.shape
    N = w.shape[2]

    tm, Mp = _tile_and_pad(M, tm_target, 16, 256)    # bf16 sublane packing for A
    tk, Kp = _tile_and_pad(K, tk_target, 128, 256)   # lane dim of A / sublane dim of W
    tn, Np = _tile_and_pad(N, tn_target, 128, 256)   # lane dim of W / output

    # No zeros+set round trips: pass through when already aligned (the common case --
    # im2col emits 128-aligned K and M/N are aligned for the real layer shapes).
    a_p = a if a.dtype == jnp.bfloat16 else a.astype(jnp.bfloat16)
    if (Mp, Kp) != (M, K):
        a_p = jnp.pad(a_p, ((0, 0), (0, Mp - M), (0, Kp - K)))
    w_p = w if w.dtype == jnp.bfloat16 else w.astype(jnp.bfloat16)
    if (Kp, Np) != (K, N):
        w_p = jnp.pad(w_p, ((0, 0), (0, Kp - K), (0, Np - N)))
    b_p = b.astype(jnp.float32).reshape(G, 1, N)
    if Np != N:
        b_p = jnp.pad(b_p, ((0, 0), (0, 0), (0, Np - N)))

    grid = (G, Mp // tm, Np // tn, Kp // tk)

    # Double-buffered VMEM footprint (lane/sublane padded), used to size the scoped limit.
    lane = lambda d: _round_up(d, 128)
    sub = lambda d: _round_up(d, 8)
    out_bytes = jnp.dtype(out_dtype).itemsize
    vmem_est = (2 * sub(tm) * lane(tk) * 2          # A blocks (bf16, x2 buffers)
                + 2 * sub(tk) * lane(tn) * 2        # W blocks
                + 2 * 8 * lane(tn) * 4              # bias blocks
                + 2 * sub(tm) * lane(tn) * out_bytes  # output blocks
                + sub(tm) * lane(tn) * 4)           # f32 accumulator scratch
    vmem_limit = int(min(max(32 << 20, 2 * vmem_est), 48 << 20))

    cost = pl.CostEstimate(
        flops=2 * G * Mp * Kp * Np,
        transcendentals=0,
        bytes_accessed=(a_p.size * 2 + w_p.size * 2 + b_p.size * 4
                        + G * Mp * Np * out_bytes),
    )

    out = pl.pallas_call(
        functools.partial(_gmm_bias_kernel, relu=relu),
        out_shape=jax.ShapeDtypeStruct((G, Mp, Np), out_dtype),
        grid_spec=pltpu.PrefetchScalarGridSpec(
            num_scalar_prefetch=0,
            grid=grid,
            in_specs=[
                pl.BlockSpec((1, tm, tk), lambda g, i, j, k: (g, i, k)),
                pl.BlockSpec((1, tk, tn), lambda g, i, j, k: (g, k, j)),
                pl.BlockSpec((1, 1, tn), lambda g, i, j, k: (g, 0, j)),
            ],
            out_specs=pl.BlockSpec((1, tm, tn), lambda g, i, j, k: (g, i, j)),
            scratch_shapes=[pltpu.VMEM((tm, tn), jnp.float32)],
        ),
        compiler_params=pltpu.CompilerParams(
            dimension_semantics=("parallel", "parallel", "parallel", "arbitrary"),
            vmem_limit_bytes=vmem_limit,
        ),
        cost_estimate=cost,
    )(a_p, w_p, b_p)

    if (Mp, Np) != (M, N):
        out = out[:, :M, :N]
    return out


# ----------------------------------------------------------------------------
# im2col glue (pad / slice / concat only; the matmul runs in the Pallas kernel)
# ----------------------------------------------------------------------------
def _im2col_2d(x, kh, kw, stride, pad, k_align=128):
    """x: (B,H,W,C) -> bf16 patches (B*Ho*Wo, Kp), Ho, Wo.  Tap order (dy, dx, c).
    K = kh*kw*C is zero-padded up to a multiple of `k_align` inside the single
    concatenate pass (no extra pad round trip)."""
    x = x.astype(jnp.bfloat16)
    B, H, W, C = x.shape
    xp = jnp.pad(x, ((0, 0), (pad, pad), (pad, pad), (0, 0)))
    Hp, Wp = H + 2 * pad, W + 2 * pad
    Ho = (Hp - kh) // stride + 1
    Wo = (Wp - kw) // stride + 1
    cols = []
    for dy in range(kh):
        for dx in range(kw):
            cols.append(xp[:, dy:dy + stride * (Ho - 1) + 1:stride,
                              dx:dx + stride * (Wo - 1) + 1:stride, :])
    K = kh * kw * C
    Kp = _round_up(K, k_align)
    if Kp != K:
        cols.append(jnp.zeros((B, Ho, Wo, Kp - K), jnp.bfloat16))
    patches = jnp.concatenate(cols, axis=-1).reshape(B * Ho * Wo, Kp)
    return patches, Ho, Wo


def conv2d_pair(x, wb_pair, *, stride, pad, relu, out_dtype):
    """Two independent Conv2d streams as one grouped matmul.
       x: (2, B, H, W, Cin).  wb_pair: [ (w (Cout,Cin,kh,kw), b (Cout,)) ]*2."""
    (w0, b0), (w1, b1) = wb_pair
    Cout, Cin, kh, kw = w0.shape
    G, B, H, W, _ = x.shape
    patches, Ho, Wo = _im2col_2d(x.reshape(G * B, H, W, Cin), kh, kw, stride, pad)
    Kp = patches.shape[1]
    a = patches.reshape(G, B * Ho * Wo, Kp)
    wm = jnp.stack(
        [_pad_rows(jnp.transpose(w, (2, 3, 1, 0)).reshape(kh * kw * Cin, Cout), Kp)
         for w in (w0, w1)], axis=0)
    bm = jnp.stack([b0, b1], axis=0)
    out = grouped_matmul_bias(a, wm, bm, relu=relu, out_dtype=out_dtype)
    return out.reshape(G, B, Ho, Wo, Cout)


def _convT_weight_subpixel(w_pt):
    """PyTorch ConvTranspose2d weight (Cin,Cout,5,5) with s=2, p=2, output_padding=1
       -> (9*Cin, 4*Cout) stride-1 direct weight over a 3x3 window of the pad-1 input,
       producing the 4 sub-pixel output phases (rh,rw) = (0,0),(0,1),(1,0),(1,1) along N."""
    Cin, Cout, _, _ = w_pt.shape
    taps = {0: (4, 2, 0), 1: (-1, 3, 1)}   # window offset -> transposed-kernel index (-1 = zero)
    wmat = jnp.zeros((3, 3, Cin, 4 * Cout), w_pt.dtype)
    for rh in (0, 1):
        for rw in (0, 1):
            col0 = (rh * 2 + rw) * Cout
            for ty, dy in enumerate(taps[rh]):
                if dy < 0:
                    continue
                for tx, dx in enumerate(taps[rw]):
                    if dx < 0:
                        continue
                    wmat = wmat.at[ty, tx, :, col0:col0 + Cout].set(w_pt[:, :, dy, dx])
    return wmat.reshape(9 * Cin, 4 * Cout)


def conv_transpose2d_pair(x, wb_pair, *, relu, out_dtype):
    """ConvTranspose2d(k=5, s=2, p=2, output_padding=1) for two streams via sub-pixel conv
       + depth-to-space (no zero-inserted input, no wasted MACs).  x: (2, B, H, W, Cin)."""
    (w0, b0), (w1, b1) = wb_pair
    Cin, Cout = w0.shape[0], w0.shape[1]
    G, B, H, W, _ = x.shape
    patches, _, _ = _im2col_2d(x.reshape(G * B, H, W, Cin), 3, 3, 1, 1)   # Ho=H, Wo=W
    Kp = patches.shape[1]
    a = patches.reshape(G, B * H * W, Kp)
    wm = jnp.stack([_pad_rows(_convT_weight_subpixel(w0), Kp),
                    _pad_rows(_convT_weight_subpixel(w1), Kp)], axis=0)
    bm = jnp.stack([jnp.tile(b0, 4), jnp.tile(b1, 4)], axis=0)            # bias per phase block
    out = grouped_matmul_bias(a, wm, bm, relu=relu, out_dtype=out_dtype)
    o = out.reshape(G, B, H, W, 2, 2, Cout)                               # (g,b,m,n,rh,rw,c)
    o = jnp.transpose(o, (0, 1, 2, 4, 3, 5, 6)).reshape(G, B, 2 * H, 2 * W, Cout)
    return o


def conv1d_pair(x, wb_pair, *, pad, relu, out_dtype):
    """Two Conv1d streams over (B, L, Cin).  x: (2, B, L, Cin).  w_pt: (Cout, Cin, k)."""
    (w0, b0), (w1, b1) = wb_pair
    Cout, Cin, k = w0.shape
    G, B, L, _ = x.shape
    Lo = L + 2 * pad - k + 1
    xb = x.reshape(G * B, L, Cin).astype(jnp.bfloat16)
    xp = jnp.pad(xb, ((0, 0), (pad, pad), (0, 0)))
    cols = [xp[:, d:d + Lo, :] for d in range(k)]
    K = k * Cin
    Kp = _round_up(K, 128)
    if Kp != K:
        cols.append(jnp.zeros((G * B, Lo, Kp - K), jnp.bfloat16))
    a = jnp.concatenate(cols, axis=-1).reshape(G, B * Lo, Kp)
    wm = jnp.stack([_pad_rows(jnp.transpose(w, (2, 1, 0)).reshape(K, Cout), Kp)
                    for w in (w0, w1)], axis=0)
    bm = jnp.stack([b0, b1], axis=0)
    out = grouped_matmul_bias(a, wm, bm, relu=relu, out_dtype=out_dtype)
    return out.reshape(G, B, Lo, Cout)


# ----------------------------------------------------------------------------
# Deterministic parameter construction (synthetic weights, no checkpoint)
# ----------------------------------------------------------------------------
def make_params(key, M, N2, num_features=3, M1=256):
    keys = jax.random.split(key, 16)
    p = {}

    def conv2d_p(k, cout, cin):
        kw, kb = jax.random.split(k)
        fan = cin * 25
        return (jax.random.normal(kw, (cout, cin, 5, 5), jnp.float32) / math.sqrt(fan),
                jax.random.normal(kb, (cout,), jnp.float32) * 0.01)

    def convT2d_p(k, cin, cout):
        kw, kb = jax.random.split(k)
        fan = cin * 25
        return (jax.random.normal(kw, (cin, cout, 5, 5), jnp.float32) / math.sqrt(fan),
                jax.random.normal(kb, (cout,), jnp.float32) * 0.01)

    def conv1d_p(k, cout, cin):
        kw, kb = jax.random.split(k)
        fan = cin * 3
        return (jax.random.normal(kw, (cout, cin, 3), jnp.float32) / math.sqrt(fan),
                jax.random.normal(kb, (cout,), jnp.float32) * 0.01)

    # Enc_l / Enc_r (conv3p is unused by the reference forward -> omitted)
    for side, base in (("enc_l", 0), ("enc_r", 4)):
        p[side] = {
            "c1": conv2d_p(keys[base + 0], M1, num_features),
            "c2": conv2d_p(keys[base + 1], M1, M1),
            "c3": conv2d_p(keys[base + 2], M1, M1),
            "c4": conv1d_p(keys[base + 3], N2, M1),
        }
    # Decoder is Dec(num_features, M, N2) -> Dec.M1 = M, Dec.N = N2
    # (conv3p / fusion modules are unused by the reference forward -> omitted)
    for side, base in (("dec_l", 8), ("dec_r", 12)):
        p[side] = {
            "c1": convT2d_p(keys[base + 0], N2, M),
            "c2": convT2d_p(keys[base + 1], M, M),
            "c3": convT2d_p(keys[base + 2], M, M),
            "c4": conv1d_p(keys[base + 3], 3, M),
        }
    return p


# ----------------------------------------------------------------------------
# Forward passes (NHWC internally, intermediates bf16, final f32)
# ----------------------------------------------------------------------------
def encoders_fwd(params, x):
    el, er = params["enc_l"], params["enc_r"]
    act = jnp.bfloat16
    x = conv2d_pair(x, [el["c1"], er["c1"]], stride=2, pad=2, relu=True, out_dtype=act)
    x = conv2d_pair(x, [el["c2"], er["c2"]], stride=2, pad=2, relu=True, out_dtype=act)
    x = conv2d_pair(x, [el["c3"], er["c3"]], stride=2, pad=2, relu=True, out_dtype=act)
    G, B, H, W, C = x.shape
    x = conv1d_pair(x.reshape(G, B, H * W, C), [el["c4"], er["c4"]],
                    pad=1, relu=False, out_dtype=jnp.float32)
    return x.reshape(G, B, H, W, -1)                                  # (2, B, H/8, W/8, N2)


def decoder_fwd(params, y):
    dl, dr = params["dec_l"], params["dec_r"]
    act = jnp.bfloat16
    x = conv_transpose2d_pair(y, [dl["c1"], dr["c1"]], relu=True, out_dtype=act)
    x = conv_transpose2d_pair(x, [dl["c2"], dr["c2"]], relu=True, out_dtype=act)
    x = conv_transpose2d_pair(x, [dl["c3"], dr["c3"]], relu=True, out_dtype=act)
    G, B, H, W, C = x.shape
    x = conv1d_pair(x.reshape(G, B, H * W, C), [dl["c4"], dr["c4"]],
                    pad=1, relu=False, out_dtype=jnp.float32)
    return x.reshape(G, B, H, W, 3)                                   # (2, B, 8h, 8w, 3)


def image_coding_forward(params, x_l_nchw, x_r_nchw):
    # NCHW (PyTorch) -> NHWC (kernel layout), streams stacked on a leading G=2 axis.
    x = jnp.stack([jnp.transpose(x_l_nchw, (0, 2, 3, 1)),
                   jnp.transpose(x_r_nchw, (0, 2, 3, 1))], axis=0)

    y = encoders_fwd(params, x)

    # TODO(synk): Channel(5) class is not defined in the reference source; treated as an
    # identity pass-through (channel_output = channel_input, channel_usage ignored).
    ch = y

    out = decoder_fwd(params, ch)

    # back to NCHW
    return (jnp.transpose(out[0], (0, 3, 1, 2)), jnp.transpose(out[1], (0, 3, 1, 2)))


# ----------------------------------------------------------------------------
# Reference for the sub-pixel ConvTranspose2d remapping (correctness check only)
# ----------------------------------------------------------------------------
def _convT_ref(x_nhwc, w_pt, b):
    """f32 ConvTranspose2d(k=5, s=2, p=2, output_padding=1) via lhs-dilated conv."""
    w_hwio = jnp.flip(w_pt, axis=(2, 3)).transpose(2, 3, 0, 1)        # (5,5,Cin,Cout)
    y = jax.lax.conv_general_dilated(
        x_nhwc, w_hwio, window_strides=(1, 1), padding=[(2, 3), (2, 3)],
        lhs_dilation=(2, 2), dimension_numbers=("NHWC", "HWIO", "NHWC"),
        precision=jax.lax.Precision.HIGHEST)
    return y + b


# ----------------------------------------------------------------------------
if __name__ == "__main__":
    # small but structurally faithful sizes: M=32, N2=8, num_features=3, M1=32
    M, N2, NUM_FEATURES, M1 = 32, 8, 3, 32
    B, H, W = 2, 16, 16

    key = jax.random.PRNGKey(0)
    kp, kl, kr, kc = jax.random.split(key, 4)
    params = make_params(kp, M=M, N2=N2, num_features=NUM_FEATURES, M1=M1)

    # Numerical check of the sub-pixel ConvTranspose2d weight remapping (bf16 tolerance).
    cw, cb = params["dec_l"]["c2"]                                    # (M, M, 5, 5)
    xt = jax.random.normal(kc, (1, 4, 4, cw.shape[0]), jnp.float32)
    got = conv_transpose2d_pair(jnp.stack([xt, xt]), [(cw, cb), (cw, cb)],
                                relu=False, out_dtype=jnp.float32)[0]
    ref = _convT_ref(xt, cw, cb)
    err = float(jnp.max(jnp.abs(got - ref)))
    assert err < 5e-2, f"convT sub-pixel mapping mismatch: max|diff|={err}"

    x_l = jax.random.normal(kl, (B, NUM_FEATURES, H, W), jnp.float32)
    x_r = jax.random.normal(kr, (B, NUM_FEATURES, H, W), jnp.float32)

    fwd = jax.jit(functools.partial(image_coding_forward, params))
    out_l, out_r = fwd(x_l, x_r)
    jax.block_until_ready((out_l, out_r))

    assert out_l.shape == (B, 3, H, W), out_l.shape
    assert out_r.shape == (B, 3, H, W), out_r.shape
    assert bool(jnp.all(jnp.isfinite(out_l))) and bool(jnp.all(jnp.isfinite(out_r)))
    print("KERNEL_OK")
</pallas_src>

<mosaic_0001>
module attributes {stable_mosaic.version = 11 : i64} {
  func.func @_gmm_bias_kernel(%arg0: i32, %arg1: i32, %arg2: i32, %arg3: i32, %arg4: memref<1x16x384xbf16, #tpu.memory_space<vmem>>, %arg5: memref<1x384x128xbf16, #tpu.memory_space<vmem>>, %arg6: memref<1x1x128xf32, #tpu.memory_space<vmem>>, %arg7: memref<1x16x128xf32, #tpu.memory_space<vmem>>, %arg8: memref<16x128xf32, #tpu.memory_space<vmem>>) attributes {dimension_semantics = [#tpu.dimension_semantics<parallel>, #tpu.dimension_semantics<parallel>, #tpu.dimension_semantics<parallel>, #tpu.dimension_semantics<arbitrary>], iteration_bounds = array<i64: 2, 1, 1, 1>, scalar_prefetch = 0 : i64, scratch_operands = 1 : i64, tpu.core_type = #tpu.core_type<tc>, window_params = [{transform_indices = @transform_0, window_bounds = array<i64: 1, 16, 384>}, {transform_indices = @transform_1, window_bounds = array<i64: 1, 384, 128>}, {transform_indices = @transform_2, window_bounds = array<i64: 1, 1, 128>}, {transform_indices = @transform_3, window_bounds = array<i64: 1, 16, 128>}]} {
    %c0_i32 = arith.constant 0 : i32
    %0 = arith.cmpi eq, %arg3, %c0_i32 : i32
    %1 = arith.extui %0 : i1 to i32
    %c0_i32_0 = arith.constant 0 : i32
    %2 = arith.cmpi ne, %1, %c0_i32_0 : i32
    scf.if %2 {
      %cst_12 = arith.constant 0.000000e+00 : f32
      %14 = vector.broadcast %cst_12 : f32 to vector<16x128xf32>
      %c0_13 = arith.constant 0 : index
      %c0_14 = arith.constant 0 : index
      %15 = vector.load %arg8[%c0_13, %c0_14] : memref<16x128xf32, #tpu.memory_space<vmem>>, vector<16x128xf32>
      tpu.vector_store %arg8[%c0_13, %c0_14], %14 {strides = array<i32>} : memref<16x128xf32, #tpu.memory_space<vmem>>, vector<16x128xf32>,
    } else {
    }
    %c0 = arith.constant 0 : index
    %c0_1 = arith.constant 0 : index
    %3 = vector.load %arg8[%c0, %c0_1] : memref<16x128xf32, #tpu.memory_space<vmem>>, vector<16x128xf32>
    %c0_2 = arith.constant 0 : index
    %c0_3 = arith.constant 0 : index
    %c0_4 = arith.constant 0 : index
    %4 = vector.load %arg4[%c0_2, %c0_3, %c0_4] : memref<1x16x384xbf16, #tpu.memory_space<vmem>>, vector<1x16x384xbf16>
    %5 = vector.shape_cast %4 : vector<1x16x384xbf16> to vector<16x384xbf16>
    %c0_5 = arith.constant 0 : index
    %c0_6 = arith.constant 0 : index
    %c0_7 = arith.constant 0 : index
    %6 = vector.load %arg5[%c0_5, %c0_6, %c0_7] : memref<1x384x128xbf16, #tpu.memory_space<vmem>>, vector<1x384x128xbf16>
    %7 = vector.shape_cast %6 : vector<1x384x128xbf16> to vector<384x128xbf16>
    %cst = arith.constant dense<0.000000e+00> : vector<16x128xf32>
    %8 = tpu.matmul %5, %7, %cst {dimension_numbers = #tpu.dot_dimension_numbers<[1], [0], [0], [1], [0, 0, 1, 1], [], []>} : vector<16x384xbf16>, vector<384x128xbf16>, vector<16x128xf32> -> vector<16x128xf32>
    %9 = arith.addf %3, %8 : vector<16x128xf32>
    %c0_8 = arith.constant 0 : index
    %c0_9 = arith.constant 0 : index
    %10 = vector.load %arg8[%c0_8, %c0_9] : memref<16x128xf32, #tpu.memory_space<vmem>>, vector<16x128xf32>
    tpu.vector_store %arg8[%c0_8, %c0_9], %9 {strides = array<i32>} : memref<16x128xf32, #tpu.memory_space<vmem>>, vector<16x128xf32>,
    %c0_i32_10 = arith.constant 0 : i32
    %11 = arith.cmpi eq, %arg3, %c0_i32_10 : i32
    %12 = arith.extui %11 : i1 to i32
    %c0_i32_11 = arith.constant 0 : i32
    %13 = arith.cmpi ne, %12, %c0_i32_11 : i32
    scf.if %13 {
      %c0_12 = arith.constant 0 : index
      %c0_13 = arith.constant 0 : index
      %14 = vector.load %arg8[%c0_12, %c0_13] : memref<16x128xf32, #tpu.memory_space<vmem>>, vector<16x128xf32>
      %c0_14 = arith.constant 0 : index
      %c0_15 = arith.constant 0 : index
      %c0_16 = arith.constant 0 : index
      %15 = vector.load %arg6[%c0_14, %c0_15, %c0_16] : memref<1x1x128xf32, #tpu.memory_space<vmem>>, vector<1x1x128xf32>
      %16 = vector.shape_cast %15 : vector<1x1x128xf32> to vector<1x128xf32>
      %17 = vector.broadcast %16 : vector<1x128xf32> to vector<16x128xf32>
      %18 = arith.addf %14, %17 : vector<16x128xf32>
      %c0_17 = arith.constant 0 : index
      %c0_18 = arith.constant 0 : index
      %c0_19 = arith.constant 0 : index
      %19 = vector.load %arg7[%c0_17, %c0_18, %c0_19] : memref<1x16x128xf32, #tpu.memory_space<vmem>>, vector<1x16x128xf32>
      %20 = vector.shape_cast %19 : vector<1x16x128xf32> to vector<16x128xf32>
      %21 = vector.shape_cast %18 : vector<16x128xf32> to vector<1x16x128xf32>
      tpu.vector_store %arg7[%c0_17, %c0_18, %c0_19], %21 {strides = array<i32>} : memref<1x16x128xf32, #tpu.memory_space<vmem>>, vector<1x16x128xf32>,
    } else {
    }
    return
  }
  func.func @transform_0(%arg0: i32, %arg1: i32, %arg2: i32, %arg3: i32) -> (i32, i32, i32) {
    %c0_i32 = arith.constant 0 : i32
    return %arg0, %arg1, %arg3 : i32, i32, i32
  }
  func.func @transform_1(%arg0: i32, %arg1: i32, %arg2: i32, %arg3: i32) -> (i32, i32, i32) {
    %c0_i32 = arith.constant 0 : i32
    return %arg0, %arg3, %arg2 : i32, i32, i32
  }
  func.func @transform_2(%arg0: i32, %arg1: i32, %arg2: i32, %arg3: i32) -> (i32, i32, i32) {
    %c0_i32 = arith.constant 0 : i32
    %c0_i32_0 = arith.constant 0 : i32
    return %arg0, %c0_i32, %arg2 : i32, i32, i32
  }
  func.func @transform_3(%arg0: i32, %arg1: i32, %arg2: i32, %arg3: i32) -> (i32, i32, i32) {
    %c0_i32 = arith.constant 0 : i32
    return %arg0, %arg1, %arg2 : i32, i32, i32
  }
}

</mosaic_0001>

<llo_original>
// kernel: tpu_custom_call.1
$region0: #{tpu_custom_call.1}
  #allocation0 [shape = 'u32[]', space=smem, size = 0x4, offset = 0x4, fixed_abs, tag = 'smem constant byte address 0x4 - core index']
  #allocation1 [shape = 'u32[144,128]{1,0:T(1,128)}', space=vmem, size = 0x12000, scoped, tag = 'internal scratch']
  #allocation2 [shape = 'f32[16,128]{1,0:T(8,128)}', space=vmem, size = 0x2000, scoped, tag = 'scratch operand']
  %s0 = inlined_call_operand.hbm [shape: bf16[2,16,384], index: 0, kind: input, shape index: {}]
  %s1 = inlined_call_operand.hbm [shape: bf16[2,384,128], index: 1, kind: input, shape index: {}]
  %s2 = inlined_call_operand.vmem [shape: f32[2,1,128], index: 2, kind: input, shape index: {}]
  %s3 = inlined_call_operand.hbm [shape: f32[2,16,128], index: 3, kind: output, shape index: {}]
  %s4 = sld [smem:[#allocation0]]
  $region61: #{tpu_custom_call.1} parent=0
    _
  %s6 = ssub.s32 1, %s4
  %s7 = scalar_select 0, %s6, %s4
  $region1: #{tpu_custom_call.1} parent=0
    #allocation3 [shape = 'u8[24576]{0}', space=vmem, size = 0x6000, scoped, tag = 'input window, operand 0']
    #allocation4 [shape = 's32[2]{0}', space=sflag, size = 0x8, scoped, tag = 'scoped memory for tpu_custom_call.1']
    #allocation5 [shape = 's32[2]{0}', space=sflag, size = 0x8, scoped, tag = 'scoped memory for tpu_custom_call.1']
    #allocation6 [shape = 'u8[196608]{0}', space=vmem, size = 0x30000, scoped, tag = 'input window, operand 1']
    #allocation7 [shape = 's32[2]{0}', space=sflag, size = 0x8, scoped, tag = 'scoped memory for tpu_custom_call.1']
    #allocation8 [shape = 'u8[16384]{0}', space=vmem, size = 0x4000, scoped, tag = 'output window, operand 0']
    %8 = vsyncpa [#allocation4], 0
    %s9 = scalar_lea.sflag [#allocation4], 1
    %10 = vsyncpa %s9, 0
    %11 = vsyncpa [#allocation7], 0
    %s12 = scalar_lea.sflag [#allocation7], 1
    %13 = vsyncpa %s12, 0
    %14 = vsyncpa [#allocation5], 0
    %s15 = scalar_lea.sflag [#allocation5], 1
    %16 = vsyncpa %s15, 0
    loop: start=0, step=1, limit=4
    $region2: #{tpu_custom_call.1} parent=1 // loop_pre_header
      _
    $region3: #{tpu_custom_call.1} parent=1 // loop_header
      %s18 = sphi 0, %s22
      %p19 = scmp.ge.s32.totalorder %s18, 4
      %s25 = sphi 0, %s51
      %s26 = sphi 0, %s47
      %s27 = sphi 0, %s43
      %s28 = sphi 0, %s39
      %s29 = sphi 0, %s25
      %s30 = sphi 0, %s26
      %s31 = sphi 0, %s27
      %s32 = sphi 0, %s28
      %s33 = sphi 0, %s29
      %s34 = sphi 0, %s30
      %s35 = sphi 0, %s31
      %s36 = sphi 0, %s32
      %s58 = sphi 0, %s60
      %s61 = sphi 0, %s58
      %s62 = sphi 0, %s61
      %s78 = sphi 0, %s62
      %s88 = sphi 0, %s90
      %s91 = sphi 0, %s88
      %s92 = sphi 0, %s91
      %s108 = sphi 0, %s92
      %s116 = sphi 0, %s118
      %s119 = sphi 0, %s116
      %s120 = sphi 0, %s119
      %s136 = sphi 0, %s120
      %s146 = sphi 0, %s148
      %s149 = sphi 0, %s146
      %s150 = sphi 0, %s149
      %s166 = sphi 0, %s150
    $region4: #{tpu_custom_call.1} parent=1 // loop_header_branch
      %21 = sbr.rel (%p19) target = $region8
    $region5: #{tpu_custom_call.1} parent=1 // loop_body
      %s23 = ssub.s32 %s18, 1
      %s24 = ssub.s32 %s18, 2
      %s37 = sadd.s32 1, %s28
      %p38 = scmp.ge.s32.totalorder %s37, 1
      %s39 = scalar_select %p38, 0, %s37
      %s40 = sadd.s32 1, %s27
      %s41 = scalar_select %p38, %s40, %s27
      %p42 = scmp.ge.s32.totalorder %s41, 1
      %s43 = scalar_select %p42, 0, %s41
      %s44 = sadd.s32 1, %s26
      %s45 = scalar_select %p42, %s44, %s26
      %p46 = scmp.ge.s32.totalorder %s45, 1
      %s47 = scalar_select %p46, 0, %s45
      %s48 = sadd.s32 1, %s25
      %s49 = scalar_select %p46, %s48, %s25
      %p50 = scmp.ge.s32.totalorder %s49, 2
      %s51 = scalar_select %p50, 0, %s49
      %s52 = ssub.s32 %s25, %s51
      %s53 = ssub.s32 %s26, %s47
      %s54 = sor.u32 %s52, %s53
      %s55 = ssub.s32 %s28, %s39
      %s56 = sor.u32 %s54, %s55
      %p57 = scmp.eq.s32.totalorder %s56, 0
      %s59 = sadd.s32 %s58, 1
      %s60 = scalar_select %p57, %s58, %s59
      %p63 = pneg %p57
      %p64 = scmp.eq.s32.totalorder %s18, 1
      %p65 = por %p63, %p64
      %p66 = scmp.ne.s32.totalorder %s58, %s61
      %p67 = scmp.eq.s32.totalorder %s18, 0
      %p68 = por %p66, %p67
      %p69 = scmp.ne.s32.totalorder %s58, %s61
      %p70 = scmp.eq.s32.totalorder %s23, 1
      %p71 = por %p69, %p70
      %p72 = scmp.ne.s32.totalorder %s61, %s62
      %p73 = scmp.eq.s32.totalorder %s23, 0
      %p74 = por %p72, %p73
      %p75 = scmp.ne.s32.totalorder %s61, %s62
      %p76 = scmp.eq.s32.totalorder %s24, 1
      %p77 = por %p75, %p76
      %p79 = scmp.ne.s32.totalorder %s62, %s78
      %p80 = scmp.eq.s32.totalorder %s24, 0
      %p81 = por %p79, %p80
      %s82 = ssub.s32 %s25, %s51
      %s83 = ssub.s32 %s28, %s39
      %s84 = sor.u32 %s82, %s83
      %s85 = ssub.s32 %s27, %s43
      %s86 = sor.u32 %s84, %s85
      %p87 = scmp.eq.s32.totalorder %s86, 0
      %s89 = sadd.s32 %s88, 1
      %s90 = scalar_select %p87, %s88, %s89
      %p93 = pneg %p87
      %p94 = scmp.eq.s32.totalorder %s18, 1
      %p95 = por %p93, %p94
      %p96 = scmp.ne.s32.totalorder %s88, %s91
      %p97 = scmp.eq.s32.totalorder %s18, 0
      %p98 = por %p96, %p97
      %p99 = scmp.ne.s32.totalorder %s88, %s91
      %p100 = scmp.eq.s32.totalorder %s23, 1
      %p101 = por %p99, %p100
      %p102 = scmp.ne.s32.totalorder %s91, %s92
      %p103 = scmp.eq.s32.totalorder %s23, 0
      %p104 = por %p102, %p103
      %p105 = scmp.ne.s32.totalorder %s91, %s92
      %p106 = scmp.eq.s32.totalorder %s24, 1
      %p107 = por %p105, %p106
      %p109 = scmp.ne.s32.totalorder %s92, %s108
      %p110 = scmp.eq.s32.totalorder %s24, 0
      %p111 = por %p109, %p110
      %s112 = ssub.s32 %s25, %s51
      %s113 = ssub.s32 %s27, %s43
      %s114 = sor.u32 %s112, %s113
      %p115 = scmp.eq.s32.totalorder %s114, 0
      %s117 = sadd.s32 %s116, 1
      %s118 = scalar_select %p115, %s116, %s117
      %p121 = pneg %p115
      %p122 = scmp.eq.s32.totalorder %s18, 1
      %p123 = por %p121, %p122
      %p124 = scmp.ne.s32.totalorder %s116, %s119
      %p125 = scmp.eq.s32.totalorder %s18, 0
      %p126 = por %p124, %p125
      %p127 = scmp.ne.s32.totalorder %s116, %s119
      %p128 = scmp.eq.s32.totalorder %s23, 1
      %p129 = por %p127, %p128
      %p130 = scmp.ne.s32.totalorder %s119, %s120
      %p131 = scmp.eq.s32.totalorder %s23, 0
      %p132 = por %p130, %p131
      %p133 = scmp.ne.s32.totalorder %s119, %s120
      %p134 = scmp.eq.s32.totalorder %s24, 1
      %p135 = por %p133, %p134
      %p137 = scmp.ne.s32.totalorder %s120, %s136
      %p138 = scmp.eq.s32.totalorder %s24, 0
      %p139 = por %p137, %p138
      %s140 = ssub.s32 %s25, %s51
      %s141 = ssub.s32 %s26, %s47
      %s142 = sor.u32 %s140, %s141
      %s143 = ssub.s32 %s27, %s43
      %s144 = sor.u32 %s142, %s143
      %p145 = scmp.eq.s32.totalorder %s144, 0
      %s147 = sadd.s32 %s146, 1
      %s148 = scalar_select %p145, %s146, %s147
      %p151 = pneg %p145
      %p152 = scmp.eq.s32.totalorder %s18, 1
      %p153 = por %p151, %p152
      %p154 = scmp.ne.s32.totalorder %s146, %s149
      %p155 = scmp.eq.s32.totalorder %s18, 0
      %p156 = por %p154, %p155
      %p157 = scmp.ne.s32.totalorder %s146, %s149
      %p158 = scmp.eq.s32.totalorder %s23, 1
      %p159 = por %p157, %p158
      %p160 = scmp.ne.s32.totalorder %s149, %s150
      %p161 = scmp.eq.s32.totalorder %s23, 0
      %p162 = por %p160, %p161
      %p163 = scmp.ne.s32.totalorder %s149, %s150
      %p164 = scmp.eq.s32.totalorder %s24, 1
      %p165 = por %p163, %p164
      %p167 = scmp.ne.s32.totalorder %s150, %s166
      %p168 = scmp.eq.s32.totalorder %s24, 0
      %p169 = por %p167, %p168
      %p170 = scmp.le.s32.totalorder 1, %s18
      %p171 = scmp.lt.s32.totalorder %s18, 3
      %p172 = pnand %p170, %p171
      %p173 = pneg %p172
      // Predicated region
      $region9: #{tpu_custom_call.1} parent=5 // pred_check
        _
      $region10: #{tpu_custom_call.1} parent=5 // pred_check_branch
        %175 = sbr.rel (%p172) target = $region12
      $region11: #{tpu_custom_call.1} parent=5 // pred_region
        %s176 = ssub.s32 %s18, 1
      $region12: #{tpu_custom_call.1} parent=5 // pred_fallthru
        _
      %p177 = scmp.lt.s32.totalorder %s18, 2
      // Predicated region
      $region13: #{tpu_custom_call.1} parent=5 // pred_check
        %p178 = pneg %p177
      $region14: #{tpu_custom_call.1} parent=5 // pred_check_branch
        %180 = sbr.rel (%p178) target = $region16
      $region15: #{tpu_custom_call.1} parent=5 // pred_region
        // Predicated region
        $region17: #{tpu_custom_call.1} parent=15 // pred_check
          %p181 = pneg %p68
        $region18: #{tpu_custom_call.1} parent=15 // pred_check_branch
          %183 = sbr.rel (%p181) target = $region20
        $region19: #{tpu_custom_call.1} parent=15 // pred_region
          %s184 = sand.u32 %s58, 1
          %s185 = scalar_lea.sflag [#allocation4], %s184
          %s186 = sand.u32 %s58, 1
          %s187 = smul.addr %s186, 24
          %s188 = scalar_lea.vmem [#allocation3], %s187
          %s189 = smul.u32 2, %s26
          %s190 = smul.u32 3, %s28
          %s192 = ssub.s32 384, 384
          %193 = vsyncadd %s185, %s192
          %s194 = smul.addr %s189, 3
          %s195 = sadd.s32 %s190, %s194
          %s196 = smul.addr %s25, 6
          %s197 = sadd.s32 %s195, %s196
          %s198 = smul.addr %s197, 64
          %s199 = scalar_lea.hbm %s0, %s198
          %s200 = sshll.u32 %s188, 4
          %s201 = int_to_ptr.vmem [resolvable:$true] %s200
          %206 = dma.hbm_to_vmem [thread:$0]  %s199, 384, %s201, %s185, 192, 192, 12
        $region20: #{tpu_custom_call.1} parent=15 // pred_fallthru
          _
        // Predicated region
        $region21: #{tpu_custom_call.1} parent=15 // pred_check
          %p207 = pneg %p98
        $region22: #{tpu_custom_call.1} parent=15 // pred_check_branch
          %209 = sbr.rel (%p207) target = $region24
        $region23: #{tpu_custom_call.1} parent=15 // pred_region
          %s210 = sand.u32 %s88, 1
          %s211 = scalar_lea.sflag [#allocation7], %s210
          %s212 = sand.u32 %s88, 1
          %s213 = smul.addr %s212, 192
          %s214 = scalar_lea.vmem [#allocation6], %s213
          %s215 = smul.u32 48, %s28
          %s217 = ssub.s32 3072, 3072
          %218 = vsyncadd %s211, %s217
          %s219 = sadd.s32 %s27, %s215
          %s220 = smul.addr %s25, 48
          %s221 = sadd.s32 %s219, %s220
          %s222 = smul.addr %s221, 64
          %s223 = scalar_lea.hbm %s1, %s222
          %s224 = sshll.u32 %s214, 4
          %s225 = int_to_ptr.vmem [resolvable:$true] %s224
          %230 = dma.hbm_to_vmem [thread:$0]  %s223, 3072, %s225, %s211, 64, 64, 4
        $region24: #{tpu_custom_call.1} parent=15 // pred_fallthru
          _
        // Predicated region
        $region25: #{tpu_custom_call.1} parent=15 // pred_check
          %p231 = pneg %p126
        $region26: #{tpu_custom_call.1} parent=15 // pred_check_branch
          %233 = sbr.rel (%p231) target = $region28
        $region27: #{tpu_custom_call.1} parent=15 // pred_region
          %p234 = scmp.lt.s32.totalorder %s25, 1
          %s235 = scalar_select %p234, %s25, 1
          %p236 = scmp.lt.s32.totalorder %s27, 0
          %s237 = scalar_select %p236, %s27, 0
          %s238 = sadd.s32 %s237, %s235
          %s239 = scalar_lea.vmem %s2, %s238
        $region28: #{tpu_custom_call.1} parent=15 // pred_fallthru
          _
      $region16: #{tpu_custom_call.1} parent=5 // pred_fallthru
        _
      %p240 = scmp.le.s32.totalorder 1, %s18
      %p241 = scmp.lt.s32.totalorder %s18, 3
      %p242 = pnand %p240, %p241
      %p243 = pneg %p242
      // Predicated region
      $region29: #{tpu_custom_call.1} parent=5 // pred_check
        _
      $region30: #{tpu_custom_call.1} parent=5 // pred_check_branch
        %245 = sbr.rel (%p242) target = $region32
      $region31: #{tpu_custom_call.1} parent=5 // pred_region
        %s246 = ssub.s32 %s18, 1
        %s247 = sand.u32 %s61, 1
        %s248 = scalar_lea.sflag [#allocation4], %s247
        %s249 = sand.u32 %s61, 1
        %s250 = smul.addr %s249, 24
        %s251 = scalar_lea.vmem [#allocation3], %s250
        // Predicated region
        $region33: #{tpu_custom_call.1} parent=31 // pred_check
          %p252 = pneg %p74
        $region34: #{tpu_custom_call.1} parent=31 // pred_check_branch
          %254 = sbr.rel (%p252) target = $region36
        $region35: #{tpu_custom_call.1} parent=31 // pred_region
          %255 = dma.done %s248, 384
        $region36: #{tpu_custom_call.1} parent=31 // pred_fallthru
          _
        %s256 = sand.u32 %s91, 1
        %s257 = scalar_lea.sflag [#allocation7], %s256
        %s258 = sand.u32 %s91, 1
        %s259 = smul.addr %s258, 192
        %s260 = scalar_lea.vmem [#allocation6], %s259
        // Predicated region
        $region37: #{tpu_custom_call.1} parent=31 // pred_check
          %p261 = pneg %p104
        $region38: #{tpu_custom_call.1} parent=31 // pred_check_branch
          %263 = sbr.rel (%p261) target = $region40
        $region39: #{tpu_custom_call.1} parent=31 // pred_region
          %264 = dma.done %s257, 3072
        $region40: #{tpu_custom_call.1} parent=31 // pred_fallthru
          _
        %s265 = sand.u32 %s61, 1
        %s266 = scalar_lea.sflag [#allocation4], %s265
        %s267 = sand.u32 %s61, 1
        %s268 = smul.addr %s267, 24
        %s269 = scalar_lea.vmem [#allocation3], %s268
        %p270 = pneg %p74
        %p271 = pneg %p71
        %s272 = sand.u32 %s91, 1
        %s273 = scalar_lea.sflag [#allocation7], %s272
        %s274 = sand.u32 %s91, 1
        %s275 = smul.addr %s274, 192
        %s276 = scalar_lea.vmem [#allocation6], %s275
        %p277 = pneg %p104
        %p278 = pneg %p101
        %p279 = scmp.lt.s32.totalorder %s29, 1
        %s280 = scalar_select %p279, %s29, 1
        %p281 = scmp.lt.s32.totalorder %s31, 0
        %s282 = scalar_select %p281, %s31, 0
        %s283 = sadd.s32 %s282, %s280
        %s284 = scalar_lea.vmem %s2, %s283
        %p285 = pneg %p132
        %p286 = pneg %p129
        %p287 = pneg %p162
        %p288 = pneg %p159
        %s289 = sand.u32 %s149, 1
        %s290 = scalar_lea.sflag [#allocation5], %s289
        %s291 = sand.u32 %s149, 1
        %s292 = smul.addr %s291, 16
        %s293 = scalar_lea.vmem [#allocation8], %s292
        %s294 = smul.u32 2, %s30
        %s295 = smul.u32 3, %s32
        %s296 = smul.u32 48, %s32
        %p297 = scmp.lt.s32.totalorder %s29, 1
        %s298 = scalar_select %p297, %s29, 1
        %p299 = scmp.lt.s32.totalorder %s31, 0
        %s300 = scalar_select %p299, %s31, 0
        %s301 = sadd.s32 %s300, %s298
        %s302 = scalar_lea.vmem %s2, %s301
        %s303 = smul.u32 2, %s30
        %p305 = scmp.eq.s32.totalorder %s32, 0
        // Predicated region
        $region41: #{tpu_custom_call.1} parent=31 // pred_check
          %p306 = pneg %p305
        $region42: #{tpu_custom_call.1} parent=31 // pred_check_branch
          %308 = sbr.rel (%p306) target = $region44
        $region43: #{tpu_custom_call.1} parent=31 // pred_region
          %309 = vst [vmem:[#allocation2] sm:$0xff] 0.0
          %310 = vst [vmem:[#allocation2 + $0x8] sm:$0xff] 0.0
        $region44: #{tpu_custom_call.1} parent=31 // pred_fallthru
          _
        %v311 = vld [vmem:[#allocation2] sm:$0xff]
        %v312 = vld [vmem:[#allocation2 + $0x8] sm:$0xff]
        %v313 = vld [vmem:[%s251] sm:$0xff]
        %v314 = vld [vmem:[%s251 + $0x8] sm:$0xf]
        %v315 = vld [vmem:[%s251 + $0xc] sm:$0xff]
        %v316 = vld [vmem:[%s251 + $0x14] sm:$0xf]
        %v317 = vld [vmem:[%s260] sm:$0xf]
        %v318 = vld [vmem:[%s260 + $0x4] sm:$0xf]
        %v319 = vld [vmem:[%s260 + $0x8] sm:$0xf]
        %v320 = vld [vmem:[%s260 + $0xc] sm:$0xf]
        %v321 = vld [vmem:[%s260 + $0x10] sm:$0xf]
        %v322 = vld [vmem:[%s260 + $0x14] sm:$0xf]
        %v323 = vld [vmem:[%s260 + $0x18] sm:$0xf]
        %v324 = vld [vmem:[%s260 + $0x1c] sm:$0xf]
        %v325 = vld [vmem:[%s260 + $0x20] sm:$0xf]
        %v326 = vld [vmem:[%s260 + $0x24] sm:$0xf]
        %v327 = vld [vmem:[%s260 + $0x28] sm:$0xf]
        %v328 = vld [vmem:[%s260 + $0x2c] sm:$0xf]
        %v329 = vld [vmem:[%s260 + $0x30] sm:$0xf]
        %v330 = vld [vmem:[%s260 + $0x34] sm:$0xf]
        %v331 = vld [vmem:[%s260 + $0x38] sm:$0xf]
        %v332 = vld [vmem:[%s260 + $0x3c] sm:$0xf]
        %v333 = vld [vmem:[%s260 + $0x40] sm:$0xf]
        %v334 = vld [vmem:[%s260 + $0x44] sm:$0xf]
        %v335 = vld [vmem:[%s260 + $0x48] sm:$0xf]
        %v336 = vld [vmem:[%s260 + $0x4c] sm:$0xf]
        %v337 = vld [vmem:[%s260 + $0x50] sm:$0xf]
        %v338 = vld [vmem:[%s260 + $0x54] sm:$0xf]
        %v339 = vld [vmem:[%s260 + $0x58] sm:$0xf]
        %v340 = vld [vmem:[%s260 + $0x5c] sm:$0xf]
        %v341 = vld [vmem:[%s260 + $0x60] sm:$0xf]
        %v342 = vld [vmem:[%s260 + $0x64] sm:$0xf]
        %v343 = vld [vmem:[%s260 + $0x68] sm:$0xf]
        %v344 = vld [vmem:[%s260 + $0x6c] sm:$0xf]
        %v345 = vld [vmem:[%s260 + $0x70] sm:$0xf]
        %v346 = vld [vmem:[%s260 + $0x74] sm:$0xf]
        %v347 = vld [vmem:[%s260 + $0x78] sm:$0xf]
        %v348 = vld [vmem:[%s260 + $0x7c] sm:$0xf]
        %v349 = vld [vmem:[%s260 + $0x80] sm:$0xf]
        %v350 = vld [vmem:[%s260 + $0x84] sm:$0xf]
        %v351 = vld [vmem:[%s260 + $0x88] sm:$0xf]
        %v352 = vld [vmem:[%s260 + $0x8c] sm:$0xf]
        %v353 = vld [vmem:[%s260 + $0x90] sm:$0xf]
        %v354 = vld [vmem:[%s260 + $0x94] sm:$0xf]
        %v355 = vld [vmem:[%s260 + $0x98] sm:$0xf]
        %v356 = vld [vmem:[%s260 + $0x9c] sm:$0xf]
        %v357 = vld [vmem:[%s260 + $0xa0] sm:$0xf]
        %v358 = vld [vmem:[%s260 + $0xa4] sm:$0xf]
        %v359 = vld [vmem:[%s260 + $0xa8] sm:$0xf]
        %v360 = vld [vmem:[%s260 + $0xac] sm:$0xf]
        %v361 = vld [vmem:[%s260 + $0xb0] sm:$0xf]
        %v362 = vld [vmem:[%s260 + $0xb4] sm:$0xf]
        %v363 = vld [vmem:[%s260 + $0xb8] sm:$0xf]
        %v364 = vld [vmem:[%s260 + $0xbc] sm:$0xf]
        %v369 = vunpack.c.l.b16 %v313
        %v370 = vunpack.c.h.b16 %v313
        %v371 = vunpack.c.l.b16 %v314
        %v372 = vunpack.c.l.b16 %v315
        %v373 = vunpack.c.h.b16 %v315
        %v374 = vunpack.c.l.b16 %v316
        %v375 = vpack.c.b16 %v372, %v369
        %v376 = vpack.c.b16 %v373, %v370
        %v377 = vpack.c.b16 %v374, %v371
        %v429 = vunpack.c.l.b16 %v317
        %v430 = vunpack.c.l.b16 %v318
        %v431 = vunpack.c.l.b16 %v319
        %v432 = vunpack.c.l.b16 %v320
        %v433 = vunpack.c.l.b16 %v321
        %v434 = vunpack.c.l.b16 %v322
        %v435 = vunpack.c.l.b16 %v323
        %v436 = vunpack.c.l.b16 %v324
        %v437 = vunpack.c.l.b16 %v325
        %v438 = vunpack.c.l.b16 %v326
        %v439 = vunpack.c.l.b16 %v327
        %v440 = vunpack.c.l.b16 %v328
        %v441 = vunpack.c.l.b16 %v329
        %v442 = vunpack.c.l.b16 %v330
        %v443 = vunpack.c.l.b16 %v331
        %v444 = vunpack.c.l.b16 %v332
        %v445 = vunpack.c.l.b16 %v333
        %v446 = vunpack.c.l.b16 %v334
        %v447 = vunpack.c.l.b16 %v335
        %v448 = vunpack.c.l.b16 %v336
        %v449 = vunpack.c.l.b16 %v337
        %v450 = vunpack.c.l.b16 %v338
        %v451 = vunpack.c.l.b16 %v339
        %v452 = vunpack.c.l.b16 %v340
        %v453 = vunpack.c.l.b16 %v341
        %v454 = vunpack.c.l.b16 %v342
        %v455 = vunpack.c.l.b16 %v343
        %v456 = vunpack.c.l.b16 %v344
        %v457 = vunpack.c.l.b16 %v345
        %v458 = vunpack.c.l.b16 %v346
        %v459 = vunpack.c.l.b16 %v347
        %v460 = vunpack.c.l.b16 %v348
        %v461 = vunpack.c.l.b16 %v349
        %v462 = vunpack.c.l.b16 %v350
        %v463 = vunpack.c.l.b16 %v351
        %v464 = vunpack.c.l.b16 %v352
        %v465 = vunpack.c.l.b16 %v353
        %v466 = vunpack.c.l.b16 %v354
        %v467 = vunpack.c.l.b16 %v355
        %v468 = vunpack.c.l.b16 %v356
        %v469 = vunpack.c.l.b16 %v357
        %v470 = vunpack.c.l.b16 %v358
        %v471 = vunpack.c.l.b16 %v359
        %v472 = vunpack.c.l.b16 %v360
        %v473 = vunpack.c.l.b16 %v361
        %v474 = vunpack.c.l.b16 %v362
        %v475 = vunpack.c.l.b16 %v363
        %v476 = vunpack.c.l.b16 %v364
        %v477 = vpack.c.b16 %v430, %v429
        %v478 = vpack.c.b16 %v432, %v431
        %v479 = vpack.c.b16 %v434, %v433
        %v480 = vpack.c.b16 %v436, %v435
        %v481 = vpack.c.b16 %v438, %v437
        %v482 = vpack.c.b16 %v440, %v439
        %v483 = vpack.c.b16 %v442, %v441
        %v484 = vpack.c.b16 %v444, %v443
        %v485 = vpack.c.b16 %v446, %v445
        %v486 = vpack.c.b16 %v448, %v447
        %v487 = vpack.c.b16 %v450, %v449
        %v488 = vpack.c.b16 %v452, %v451
        %v489 = vpack.c.b16 %v454, %v453
        %v490 = vpack.c.b16 %v456, %v455
        %v491 = vpack.c.b16 %v458, %v457
        %v492 = vpack.c.b16 %v460, %v459
        %v493 = vpack.c.b16 %v462, %v461
        %v494 = vpack.c.b16 %v464, %v463
        %v495 = vpack.c.b16 %v466, %v465
        %v496 = vpack.c.b16 %v468, %v467
        %v497 = vpack.c.b16 %v470, %v469
        %v498 = vpack.c.b16 %v472, %v471
        %v499 = vpack.c.b16 %v474, %v473
        %v500 = vpack.c.b16 %v476, %v475
        %525 = vmatprep.subr.bf16.mxu0 0
        %526 = vmatpush1.bf16.msra.mxu0 %v477
        %527 = vmatprep.subr.bf16.mxu0 0
        %528 = vmatpush1.bf16.msra.mxu0 %v478
        %529 = vmatprep.subr.bf16.mxu0 0
        %530 = vmatpush1.bf16.msra.mxu0 %v479
        %531 = vmatprep.subr.bf16.mxu0 0
        %532 = vmatpush1.bf16.msra.mxu0 %v480
        %533 = vmatprep.subr.bf16.mxu0 0
        %534 = vmatpush1.bf16.msra.mxu0 %v481
        %535 = vmatprep.subr.bf16.mxu0 0
        %536 = vmatpush1.bf16.msra.mxu0 %v482
        %537 = vmatprep.subr.bf16.mxu0 0
        %538 = vmatpush1.bf16.msra.mxu0 %v483
        %539 = vmatprep.subr.bf16.mxu0 0
        %540 = vmatpush1.bf16.msra.mxu0 %v484
        %541 = vmatprep.subr.bf16.mxu0 0
        %542 = vmatpush1.bf16.msra.mxu0 %v485
        %543 = vmatprep.subr.bf16.mxu0 0
        %544 = vmatpush1.bf16.msra.mxu0 %v486
        %545 = vmatprep.subr.bf16.mxu0 0
        %546 = vmatpush1.bf16.msra.mxu0 %v487
        %547 = vmatprep.subr.bf16.mxu0 0
        %548 = vmatpush1.bf16.msra.mxu0 %v488
        %549 = vmatprep.subr.bf16.mxu0 0
        %550 = vmatpush1.bf16.msra.mxu0 %v489
        %551 = vmatprep.subr.bf16.mxu0 0
        %552 = vmatpush1.bf16.msra.mxu0 %v490
        %553 = vmatprep.subr.bf16.mxu0 0
        %554 = vmatpush1.bf16.msra.mxu0 %v491
        %555 = vmatprep.subr.bf16.mxu0 0
        %556 = vmatpush1.bf16.msra.mxu0 %v492
        %557 = vmatprep.mubr.bf16.mxu0 %v376
        %558 = vmatmul.mubr.bf16.gmra.mrb[0].mxu0 %v375
        %v559 = vpop.f32.mrb[0].mxu0
        %v560 = vadd.f32 0.0, %v559
        %v561 = vpop.f32.mrb[0].mxu0
        %v562 = vpop.f32.mrb[0].mxu0
        %v563 = vadd.f32 0.0, %v562
        %v564 = vpop.f32.mrb[0].mxu0
        %565 = vdwg.mxu0
        %566 = vmatprep.subr.bf16.mxu0 0
        %567 = vmatpush1.bf16.msra.mxu0 %v493
        %568 = vmatprep.subr.bf16.mxu0 0
        %569 = vmatpush1.bf16.msra.mxu0 %v494
        %570 = vmatprep.subr.bf16.mxu0 0
        %571 = vmatpush1.bf16.msra.mxu0 %v495
        %572 = vmatprep.subr.bf16.mxu0 0
        %573 = vmatpush1.bf16.msra.mxu0 %v496
        %574 = vmatprep.subr.bf16.mxu0 0
        %575 = vmatpush1.bf16.msra.mxu0 %v497
        %576 = vmatprep.subr.bf16.mxu0 0
        %577 = vmatpush1.bf16.msra.mxu0 %v498
        %578 = vmatprep.subr.bf16.mxu0 0
        %579 = vmatpush1.bf16.msra.mxu0 %v499
        %580 = vmatprep.subr.bf16.mxu0 0
        %581 = vmatpush1.bf16.msra.mxu0 %v500
        %582 = vmatprep.subr.bf16.mxu0 0
        %583 = vmatpush1.bf16.msra.mxu0 0
        %584 = vmatprep.subr.bf16.mxu0 0
        %585 = vmatpush1.bf16.msra.mxu0 0
        %586 = vmatprep.subr.bf16.mxu0 0
        %587 = vmatpush1.bf16.msra.mxu0 0
        %588 = vmatprep.subr.bf16.mxu0 0
        %589 = vmatpush1.bf16.msra.mxu0 0
        %590 = vmatprep.subr.bf16.mxu0 0
        %591 = vmatpush1.bf16.msra.mxu0 0
        %592 = vmatprep.subr.bf16.mxu0 0
        %593 = vmatpush1.bf16.msra.mxu0 0
        %594 = vmatprep.subr.bf16.mxu0 0
        %595 = vmatpush1.bf16.msra.mxu0 0
        %596 = vmatprep.subr.bf16.mxu0 0
        %597 = vmatpush1.bf16.msra.mxu0 0
        %598 = vmatprep.mubr.bf16.mxu0 0
        %599 = vmatmul.mubr.bf16.gmra.mrb[0].mxu0 %v377
        %v600 = vpop.f32.mrb[0].mxu0
        %v601 = vadd.f32 %v560, %v600
        %v602 = vpop.f32.mrb[0].mxu0
        %v603 = vpop.f32.mrb[0].mxu0
        %v604 = vadd.f32 %v563, %v603
        %v605 = vpop.f32.mrb[0].mxu0
        %606 = vdwg.mxu0
        %v607 = vadd.f32 %v311, %v601
        %v608 = vadd.f32 %v312, %v604
        %609 = vst [vmem:[#allocation2] sm:$0xff] %v607
        %610 = vst [vmem:[#allocation2 + $0x8] sm:$0xff] %v608
        // Predicated region
        $region45: #{tpu_custom_call.1} parent=31 // pred_check
          %p611 = pneg %p305
        $region46: #{tpu_custom_call.1} parent=31 // pred_check_branch
          %613 = sbr.rel (%p611) target = $region48
        $region47: #{tpu_custom_call.1} parent=31 // pred_region
          %v614 = vld [vmem:[#allocation2] sm:$0xff]
          %v615 = vld [vmem:[#allocation2 + $0x8] sm:$0xff]
          %v616 = vld [vmem:[%s302] sm:$0x1]
          %v618 = vlaneseq
          %v619 = vshrl.u32 %v618, 7
          %v620 = vsub.s32 0, %v619
          %v621 = vrot.slane %v616, %v620
          %v623 = vadd.f32 %v614, %v621
          %v624 = vadd.f32 %v615, %v621
          %625 = vst [vmem:[%s293] sm:$0xff] %v623
          %626 = vst [vmem:[%s293 + $0x8] sm:$0xff] %v624
        $region48: #{tpu_custom_call.1} parent=31 // pred_fallthru
          _
        %s627 = sand.u32 %s149, 1
        %s628 = scalar_lea.sflag [#allocation5], %s627
        %s629 = sand.u32 %s149, 1
        %s630 = smul.addr %s629, 16
        %s631 = scalar_lea.vmem [#allocation8], %s630
        // Predicated region
        $region49: #{tpu_custom_call.1} parent=31 // pred_check
          %p632 = pneg %p159
        $region50: #{tpu_custom_call.1} parent=31 // pred_check_branch
          %634 = sbr.rel (%p632) target = $region52
        $region51: #{tpu_custom_call.1} parent=31 // pred_region
          %s635 = smul.u32 2, %s30
          %s637 = ssub.s32 256, 256
          %638 = vsyncadd %s628, %s637
          %s639 = sadd.s32 %s31, %s635
          %s640 = smul.addr %s29, 2
          %s641 = sadd.s32 %s639, %s640
          %s642 = smul.addr %s641, 128
          %s643 = scalar_lea.hbm %s3, %s642
          %s644 = sshll.u32 %s631, 4
          %s645 = int_to_ptr.vmem [resolvable:$true] %s644
          %650 = dma.vmem_to_hbm [thread:$0]  %s645, 256, %s643, %s628, 128, 128, 8
        $region52: #{tpu_custom_call.1} parent=31 // pred_fallthru
          _
      $region32: #{tpu_custom_call.1} parent=5 // pred_fallthru
        _
      %p651 = scmp.le.s32.totalorder 2, %s18
      // Predicated region
      $region53: #{tpu_custom_call.1} parent=5 // pred_check
        %p652 = pneg %p651
      $region54: #{tpu_custom_call.1} parent=5 // pred_check_branch
        %654 = sbr.rel (%p652) target = $region56
      $region55: #{tpu_custom_call.1} parent=5 // pred_region
        %s655 = ssub.s32 %s18, 2
        // Predicated region
        $region57: #{tpu_custom_call.1} parent=55 // pred_check
          %p656 = pneg %p165
        $region58: #{tpu_custom_call.1} parent=55 // pred_check_branch
          %658 = sbr.rel (%p656) target = $region60
        $region59: #{tpu_custom_call.1} parent=55 // pred_region
          %s659 = sand.u32 %s150, 1
          %s660 = scalar_lea.sflag [#allocation5], %s659
          %s661 = sand.u32 %s150, 1
          %s662 = smul.addr %s661, 16
          %s663 = scalar_lea.vmem [#allocation8], %s662
          %664 = dma.done %s660, 256
        $region60: #{tpu_custom_call.1} parent=55 // pred_fallthru
          _
      $region56: #{tpu_custom_call.1} parent=5 // pred_fallthru
        _
    $region6: #{tpu_custom_call.1} parent=1 // loop_footer
      %s22 = sadd.s32 1, %s18
    $region7: #{tpu_custom_call.1} parent=1 // loop_footer_branch
      %17 = sbr.rel target = $region3
    $region8: #{tpu_custom_call.1} parent=1 // loop_exit
      _
    %665 = vsyncpa [#allocation4], 1
    %s666 = scalar_lea.sflag [#allocation4], 1
    %667 = vsyncpa %s666, 1
    %668 = vsyncpa [#allocation7], 1
    %s669 = scalar_lea.sflag [#allocation7], 1
    %670 = vsyncpa %s669, 1
    %671 = vsyncpa [#allocation5], 1
    %s672 = scalar_lea.sflag [#allocation5], 1
    %673 = vsyncpa %s672, 1

</llo_original>
